<compile_context>
chip_gen: v5e
topology: v5e:2x2
jax: 0.10.0
libtpu: 0.0.40
codegen_flags: <defaults>
</compile_context>

<pallas_src>
import functools

import jax
import jax.numpy as jnp
from jax.experimental import pallas as pl
from jax.experimental.pallas import tpu as pltpu


def _round_up(v, m):
    return (v + m - 1) // m * m


def _pick_tile(b, d, c):
    """Largest batch tile that keeps total VMEM within the default scoped limit."""
    budget = 12 * 1024 * 1024                    # fits v5e's 16 MiB default limit
    avail = max(budget - c * d * 4, 1 << 20)     # resident centers table
    # per row: double-buffered x (2*d), gathered center + diff/sq temps (~3*d),
    # one-hot row (c), labels/acc (small)
    per_row = (5 * d + c + 8) * 4
    tb = avail // per_row
    tb = max(8, min(1024, (tb // 8) * 8))
    return min(tb, _round_up(b, 8))


def _fisher_loss_kernel(labels_ref, x_ref, centers_ref, out_ref, acc_ref, *,
                        true_b, tb, num_classes):
    p = pl.program_id(0)          # TensorCore split (parallel)
    i = pl.program_id(1)          # batch-tile index within split (reduction)
    nb = pl.num_programs(1)

    @pl.when(i == 0)
    def _():
        acc_ref[...] = jnp.zeros_like(acc_ref)

    x = x_ref[...]                                                # (tb, D) f32
    labels = labels_ref[...]                                      # (tb, 1) i32

    # One-hot gather of each row's own center on the MXU; centers stays
    # resident in VMEM for the entire grid (constant index_map).
    classes = jax.lax.broadcasted_iota(jnp.int32, (tb, num_classes), 1)
    one_hot = (labels == classes).astype(jnp.float32)             # (tb, C)
    cent = jnp.dot(one_hot, centers_ref[...],
                   preferred_element_type=jnp.float32)            # (tb, D)

    diff = x - cent
    # Per-row sum over D on the MXU (no per-step XLU row reduction).
    ones_d = jnp.ones((diff.shape[1], 1), jnp.float32)
    sq = jnp.dot(diff * diff, ones_d,
                 preferred_element_type=jnp.float32)              # (tb, 1)
    sq = jnp.clip(sq, 1e-12, 1e12)                                # clamp, then mean
    row = (p * nb + i) * tb + jax.lax.broadcasted_iota(jnp.int32, (tb, 1), 0)
    sq = jnp.where(row < true_b, sq, 0.0)                         # mask padded rows

    acc_ref[...] = acc_ref[...] + sq                              # per-row accumulate

    @pl.when(i == nb - 1)
    def _():
        partial = jnp.sum(acc_ref[...], axis=0, keepdims=True)    # (1, 1), once per split
        out_ref[...] = jnp.broadcast_to(partial, out_ref.shape)   # lane-dense (8, 128)


def fisher_loss(x, centers, labels):
    """Returns loss_Sw (scalar, float32) exactly as FisherLoss.forward."""
    x = x.astype(jnp.float32)
    centers = centers.astype(jnp.float32)
    labels = labels.astype(jnp.int32)
    b, d = x.shape
    c = centers.shape[0]
    # TODO(synk): if C*D*4 exceeds the VMEM budget, fall back to a pipelined
    # windowed DMA gather of center rows instead of the resident table.

    tb = _pick_tile(b, d, c)
    nb = -(-b // tb)
    splits = 2 if nb >= 2 else 1          # shard the batch reduction across v7x's 2 TCs
    nb_per = -(-nb // splits)
    b_pad = splits * nb_per * tb
    if b_pad != b:
        x = jnp.pad(x, ((0, b_pad - b), (0, 0)))
        labels = jnp.pad(labels, (0, b_pad - b))
    labels2d = labels.reshape(b_pad, 1)

    kernel = functools.partial(_fisher_loss_kernel, true_b=b, tb=tb, num_classes=c)

    out = pl.pallas_call(
        kernel,
        out_shape=jax.ShapeDtypeStruct((splits * 8, 128), jnp.float32),
        grid_spec=pltpu.PrefetchScalarGridSpec(
            num_scalar_prefetch=0,
            grid=(splits, nb_per),
            in_specs=[
                pl.BlockSpec((tb, 1), lambda p, i: (p * nb_per + i, 0)),   # labels tile
                pl.BlockSpec((tb, d), lambda p, i: (p * nb_per + i, 0)),   # x tile
                pl.BlockSpec((c, d), lambda p, i: (0, 0)),                 # centers: resident
            ],
            out_specs=pl.BlockSpec((8, 128), lambda p, i: (p, 0)),
            scratch_shapes=[
                pltpu.VMEM((tb, 1), jnp.float32),                          # per-row running sums
            ],
        ),
        compiler_params=pltpu.CompilerParams(
            dimension_semantics=("parallel", "arbitrary")),
    )(labels2d, x, centers)

    partials = out.reshape(splits, 8, 128)[:, 0, 0]
    return jnp.sum(partials) * jnp.float32(1.0 / b)


def fisher_loss_ref(x, centers, labels):
    # Pure-JAX reference mirroring the PyTorch forward (returns loss_Sw).
    x = x.astype(jnp.float32)
    centers = centers.astype(jnp.float32)
    sw = (jnp.sum(x * x, axis=1, keepdims=True)
          + jnp.sum(centers * centers, axis=1)[None, :]
          - 2.0 * x @ centers.T)
    sel = sw[jnp.arange(x.shape[0]), labels]
    return jnp.mean(jnp.clip(sel, 1e-12, 1e12))


if __name__ == "__main__":
    # Deterministic parameter / input construction (module __init__: randn).
    num_classes, feat_dim, batch = 10, 32, 8

    key = jax.random.PRNGKey(0)
    k_x, k_c, k_m, k_l = jax.random.split(key, 4)

    x = jax.random.normal(k_x, (batch, feat_dim), dtype=jnp.float32)
    centers = jax.random.normal(k_c, (num_classes, feat_dim), dtype=jnp.float32)
    # feature_mean only feeds Sb, which the module discards (returns loss_Sw).
    feature_mean = jax.random.normal(k_m, (1, feat_dim), dtype=jnp.float32)  # unused
    labels = jax.random.randint(k_l, (batch,), 0, num_classes, dtype=jnp.int32)

    loss = fisher_loss(x, centers, labels)
    loss = jax.block_until_ready(loss)

    ref = fisher_loss_ref(x, centers, labels)
    # Slightly looser rtol: the kernel uses the (more accurate) direct
    # sum((x - c)^2) formulation vs the reference's matmul expansion.
    assert jnp.allclose(loss, ref, rtol=1e-4, atol=1e-5), (loss, ref)

    print("KERNEL_OK")
</pallas_src>

<mosaic_0001>
module attributes {stable_mosaic.version = 11 : i64} {
  func.func @_fisher_loss_kernel(%arg0: i32, %arg1: i32, %arg2: memref<8x1xi32, #tpu.memory_space<vmem>>, %arg3: memref<8x32xf32, #tpu.memory_space<vmem>>, %arg4: memref<10x32xf32, #tpu.memory_space<vmem>>, %arg5: memref<8x128xf32, #tpu.memory_space<vmem>>, %arg6: memref<8x1xf32, #tpu.memory_space<vmem>>) attributes {dimension_semantics = [#tpu.dimension_semantics<parallel>, #tpu.dimension_semantics<arbitrary>], iteration_bounds = array<i64: 1, 1>, scalar_prefetch = 0 : i64, scratch_operands = 1 : i64, tpu.core_type = #tpu.core_type<tc>, window_params = [{transform_indices = @transform_0, window_bounds = array<i64: 8, 1>}, {transform_indices = @transform_1, window_bounds = array<i64: 8, 32>}, {pipeline_mode = #tpu.pipeline_mode<synchronous>, transform_indices = @transform_2, window_bounds = array<i64: 10, 32>}, {transform_indices = @transform_3, window_bounds = array<i64: 8, 128>}]} {
    %c0_i32 = arith.constant 0 : i32
    %0 = arith.cmpi eq, %arg1, %c0_i32 : i32
    %1 = arith.extui %0 : i1 to i32
    %c0_i32_0 = arith.constant 0 : i32
    %2 = arith.cmpi ne, %1, %c0_i32_0 : i32
    scf.if %2 {
      %cst_18 = arith.constant 0.000000e+00 : f32
      %36 = vector.broadcast %cst_18 : f32 to vector<8x1xf32>
      %c0_19 = arith.constant 0 : index
      %c0_20 = arith.constant 0 : index
      %37 = vector.load %arg6[%c0_19, %c0_20] : memref<8x1xf32, #tpu.memory_space<vmem>>, vector<8x1xf32>
      tpu.vector_store %arg6[%c0_19, %c0_20], %36 {strides = array<i32>} : memref<8x1xf32, #tpu.memory_space<vmem>>, vector<8x1xf32>,
    } else {
    }
    %c0 = arith.constant 0 : index
    %c0_1 = arith.constant 0 : index
    %3 = vector.load %arg3[%c0, %c0_1] : memref<8x32xf32, #tpu.memory_space<vmem>>, vector<8x32xf32>
    %c0_2 = arith.constant 0 : index
    %c0_3 = arith.constant 0 : index
    %4 = vector.load %arg2[%c0_2, %c0_3] : memref<8x1xi32, #tpu.memory_space<vmem>>, vector<8x1xi32>
    %5 = tpu.iota {dimensions = array<i32: 1>} : vector<8x10xi32>
    %6 = vector.broadcast %4 : vector<8x1xi32> to vector<8x10xi32>
    %7 = arith.cmpi eq, %6, %5 : vector<8x10xi32>
    %8 = arith.extui %7 : vector<8x10xi1> to vector<8x10xi32>
    %9 = arith.sitofp %8 : vector<8x10xi32> to vector<8x10xf32>
    %c0_4 = arith.constant 0 : index
    %c0_5 = arith.constant 0 : index
    %10 = vector.load %arg4[%c0_4, %c0_5] : memref<10x32xf32, #tpu.memory_space<vmem>>, vector<10x32xf32>
    %cst = arith.constant dense<0.000000e+00> : vector<8x32xf32>
    %11 = tpu.matmul %9, %10, %cst {dimension_numbers = #tpu.dot_dimension_numbers<[1], [0], [0], [1], [0, 0, 1, 1], [], []>} : vector<8x10xf32>, vector<10x32xf32>, vector<8x32xf32> -> vector<8x32xf32>
    %12 = arith.subf %3, %11 : vector<8x32xf32>
    %cst_6 = arith.constant 1.000000e+00 : f32
    %13 = vector.broadcast %cst_6 : f32 to vector<32x1xf32>
    %14 = arith.mulf %12, %12 : vector<8x32xf32>
    %cst_7 = arith.constant dense<0.000000e+00> : vector<8x1xf32>
    %15 = tpu.matmul %14, %13, %cst_7 {dimension_numbers = #tpu.dot_dimension_numbers<[1], [0], [0], [1], [0, 0, 1, 1], [], []>} : vector<8x32xf32>, vector<32x1xf32>, vector<8x1xf32> -> vector<8x1xf32>
    %cst_8 = arith.constant 9.99999996E-13 : f32
    %cst_9 = arith.constant 9.99999995E+11 : f32
    %16 = vector.broadcast %cst_8 : f32 to vector<8x1xf32>
    %17 = arith.maximumf %16, %15 : vector<8x1xf32>
    %18 = vector.broadcast %cst_9 : f32 to vector<8x1xf32>
    %19 = arith.minimumf %18, %17 : vector<8x1xf32>
    %c1_i32 = arith.constant 1 : i32
    %20 = arith.muli %arg0, %c1_i32 : i32
    %21 = arith.addi %20, %arg1 : i32
    %c8_i32 = arith.constant 8 : i32
    %22 = arith.muli %21, %c8_i32 : i32
    %23 = tpu.iota {dimensions = array<i32: 0>} : vector<8x1xi32>
    %24 = vector.broadcast %22 : i32 to vector<8x1xi32>
    %25 = arith.addi %24, %23 : vector<8x1xi32>
    %c8_i32_10 = arith.constant 8 : i32
    %26 = vector.broadcast %c8_i32_10 : i32 to vector<8x1xi32>
    %27 = arith.cmpi slt, %25, %26 : vector<8x1xi32>
    %cst_11 = arith.constant 0.000000e+00 : f32
    %28 = vector.broadcast %cst_11 : f32 to vector<8x1xf32>
    %29 = arith.select %27, %19, %28 : vector<8x1xi1>, vector<8x1xf32>
    %c0_12 = arith.constant 0 : index
    %c0_13 = arith.constant 0 : index
    %30 = vector.load %arg6[%c0_12, %c0_13] : memref<8x1xf32, #tpu.memory_space<vmem>>, vector<8x1xf32>
    %31 = arith.addf %30, %29 : vector<8x1xf32>
    %c0_14 = arith.constant 0 : index
    %c0_15 = arith.constant 0 : index
    %32 = vector.load %arg6[%c0_14, %c0_15] : memref<8x1xf32, #tpu.memory_space<vmem>>, vector<8x1xf32>
    tpu.vector_store %arg6[%c0_14, %c0_15], %31 {strides = array<i32>} : memref<8x1xf32, #tpu.memory_space<vmem>>, vector<8x1xf32>,
    %c0_i32_16 = arith.constant 0 : i32
    %33 = arith.cmpi eq, %arg1, %c0_i32_16 : i32
    %34 = arith.extui %33 : i1 to i32
    %c0_i32_17 = arith.constant 0 : i32
    %35 = arith.cmpi ne, %34, %c0_i32_17 : i32
    scf.if %35 {
      %c0_18 = arith.constant 0 : index
      %c0_19 = arith.constant 0 : index
      %36 = vector.load %arg6[%c0_18, %c0_19] : memref<8x1xf32, #tpu.memory_space<vmem>>, vector<8x1xf32>
      %cst_20 = arith.constant dense<0.000000e+00> : vector<1xf32>
      %37 = vector.multi_reduction <add>, %36, %cst_20 [0] : vector<8x1xf32> to vector<1xf32>
      %38 = vector.shape_cast %37 : vector<1xf32> to vector<1x1xf32>
      %39 = vector.shape_cast %38 : vector<1x1xf32> to vector<1x1xf32>
      %40 = vector.broadcast %39 : vector<1x1xf32> to vector<8x128xf32>
      %c0_21 = arith.constant 0 : index
      %c0_22 = arith.constant 0 : index
      %41 = vector.load %arg5[%c0_21, %c0_22] : memref<8x128xf32, #tpu.memory_space<vmem>>, vector<8x128xf32>
      tpu.vector_store %arg5[%c0_21, %c0_22], %40 {strides = array<i32>} : memref<8x128xf32, #tpu.memory_space<vmem>>, vector<8x128xf32>,
    } else {
    }
    return
  }
  func.func @transform_0(%arg0: i32, %arg1: i32) -> (i32, i32) {
    %c1_i32 = arith.constant 1 : i32
    %0 = arith.muli %arg0, %c1_i32 : i32
    %1 = arith.addi %0, %arg1 : i32
    %c0_i32 = arith.constant 0 : i32
    %c0_i32_0 = arith.constant 0 : i32
    return %1, %c0_i32 : i32, i32
  }
  func.func @transform_1(%arg0: i32, %arg1: i32) -> (i32, i32) {
    %c1_i32 = arith.constant 1 : i32
    %0 = arith.muli %arg0, %c1_i32 : i32
    %1 = arith.addi %0, %arg1 : i32
    %c0_i32 = arith.constant 0 : i32
    %c0_i32_0 = arith.constant 0 : i32
    return %1, %c0_i32 : i32, i32
  }
  func.func @transform_2(%arg0: i32, %arg1: i32) -> (i32, i32) {
    %c0_i32 = arith.constant 0 : i32
    %c0_i32_0 = arith.constant 0 : i32
    %c0_i32_1 = arith.constant 0 : i32
    return %c0_i32, %c0_i32_0 : i32, i32
  }
  func.func @transform_3(%arg0: i32, %arg1: i32) -> (i32, i32) {
    %c0_i32 = arith.constant 0 : i32
    %c0_i32_0 = arith.constant 0 : i32
    return %arg0, %c0_i32 : i32, i32
  }
}

</mosaic_0001>

<llo_original>
// kernel: tpu_custom_call.1
$region0: #{tpu_custom_call.1}
  #allocation0 [shape = 'u32[]', space=smem, size = 0x4, offset = 0x4, fixed_abs, tag = 'smem constant byte address 0x4 - core index']
  #allocation1 [shape = 'u32[72,128]{1,0:T(1,128)}', space=vmem, size = 0x9000, scoped, tag = 'internal scratch']
  #allocation2 [shape = 'f32[8,1]{1,0:T(8,128)}', space=vmem, size = 0x1000, scoped, tag = 'scratch operand']
  %s0 = inlined_call_operand.vmem [shape: s32[8,1], index: 0, kind: input, shape index: {}]
  %s1 = inlined_call_operand.vmem [shape: f32[8,32], index: 1, kind: input, shape index: {}]
  %s2 = inlined_call_operand.hbm [shape: f32[10,32], index: 2, kind: input, shape index: {}]
  %s3 = inlined_call_operand.hbm [shape: f32[8,128], index: 3, kind: output, shape index: {}]
  %s4 = sld [smem:[#allocation0]]
  $region34: #{tpu_custom_call.1} parent=0
    _
  %s6 = ssub.s32 1, %s4
  %s7 = scalar_select 0, %s6, %s4
  $region1: #{tpu_custom_call.1} parent=0
    #allocation3 [shape = 'u8[8192]{0}', space=vmem, size = 0x2000, scoped, tag = 'input window, operand 2, single buffered']
    #allocation4 [shape = 's32[1]{0}', space=sflag, size = 0x4, scoped, tag = 'scoped memory for tpu_custom_call.1']
    #allocation5 [shape = 's32[1]{0}', space=sflag, size = 0x4, scoped, tag = 'scoped memory for tpu_custom_call.1']
    #allocation6 [shape = 'u8[4096]{0}', space=vmem, size = 0x1000, scoped, tag = 'output window, operand 0, single buffered']
    %8 = vsyncpa [#allocation4], 0
    %9 = vsyncpa [#allocation5], 0
    // Predicated region
    $region2: #{tpu_custom_call.1} parent=1 // pred_check
      _
    $region3: #{tpu_custom_call.1} parent=1 // pred_check_branch
      %11 = sbr.rel (0) target = $region5
    $region4: #{tpu_custom_call.1} parent=1 // pred_region
      %s12 = sadd.s32 0, 0
      %p13 = scmp.lt.s32.totalorder %s12, 0
      %s14 = scalar_select %p13, %s12, 0
      %s15 = smul.addr %s14, 8
      %s16 = scalar_lea.vmem %s0, %s15
      %s17 = sadd.s32 0, 0
    $region5: #{tpu_custom_call.1} parent=1 // pred_fallthru
      _
    // Predicated region
    $region6: #{tpu_custom_call.1} parent=1 // pred_check
      _
    $region7: #{tpu_custom_call.1} parent=1 // pred_check_branch
      %19 = sbr.rel (0) target = $region9
    $region8: #{tpu_custom_call.1} parent=1 // pred_region
      %s20 = sadd.s32 0, 0
      %p21 = scmp.lt.s32.totalorder %s20, 0
      %s22 = scalar_select %p21, %s20, 0
      %s23 = smul.addr %s22, 8
      %s24 = scalar_lea.vmem %s1, %s23
      %s25 = sadd.s32 0, 0
    $region9: #{tpu_custom_call.1} parent=1 // pred_fallthru
      _
    // Predicated region
    $region10: #{tpu_custom_call.1} parent=1 // pred_check
      _
    $region11: #{tpu_custom_call.1} parent=1 // pred_check_branch
      %27 = sbr.rel (0) target = $region13
    $region12: #{tpu_custom_call.1} parent=1 // pred_region
      %29 = vsyncadd [#allocation4], 0
      %s30 = sshll.u32 %s2, 4
      %s31 = int_to_ptr.hbm [resolvable:$true] %s30
      %s32 = sshll.u32 [#allocation3], 4
      %s33 = int_to_ptr.vmem [resolvable:$true] %s32
      %38 = dma.hbm_to_vmem [thread:$0]  %s31, 256, %s33, [#allocation4], 128, 128, 8
    $region13: #{tpu_custom_call.1} parent=1 // pred_fallthru
      _
    // Predicated region
    $region14: #{tpu_custom_call.1} parent=1 // pred_check
      _
    $region15: #{tpu_custom_call.1} parent=1 // pred_check_branch
      %40 = sbr.rel (0) target = $region17
    $region16: #{tpu_custom_call.1} parent=1 // pred_region
      %42 = dma.done [#allocation4], 256
    $region17: #{tpu_custom_call.1} parent=1 // pred_fallthru
      _
    %s43 = sadd.s32 0, 0
    %p44 = scmp.lt.s32.totalorder %s43, 0
    %s45 = scalar_select %p44, %s43, 0
    %s46 = smul.addr %s45, 8
    %s47 = scalar_lea.vmem %s0, %s46
    %s48 = sadd.s32 0, 0
    %p49 = scmp.lt.s32.totalorder %s48, 0
    %s50 = scalar_select %p49, %s48, 0
    %s51 = smul.addr %s50, 8
    %s52 = scalar_lea.vmem %s1, %s51
    %s53 = sadd.s32 0, 0
    %p54 = scmp.lt.s32.totalorder %s53, 0
    %s55 = scalar_select %p54, %s53, 0
    %s56 = smul.addr %s55, 8
    %s57 = scalar_lea.vmem %s0, %s56
    %s58 = sadd.s32 0, 0
    %s59 = sadd.s32 0, 0
    %p60 = scmp.lt.s32.totalorder %s59, 0
    %s61 = scalar_select %p60, %s59, 0
    %s62 = smul.addr %s61, 8
    %s63 = scalar_lea.vmem %s1, %s62
    %s64 = sadd.s32 0, 0
    %p65 = scmp.eq.s32.totalorder 0, 0
    // Predicated region
    $region18: #{tpu_custom_call.1} parent=1 // pred_check
      %p66 = pneg %p65
    $region19: #{tpu_custom_call.1} parent=1 // pred_check_branch
      %68 = sbr.rel (%p66) target = $region21
    $region20: #{tpu_custom_call.1} parent=1 // pred_region
      %vm69 = vcmask 7168
      %70 = vst.msk [vmem:[#allocation2] sm:$0xff] %vm69, 0.0
    $region21: #{tpu_custom_call.1} parent=1 // pred_fallthru
      _
    %v71 = vld [vmem:[%s63] sm:$0xff]
    %v72 = vld [vmem:[%s57] sm:$0xff]
    %v73 = vlaneseq
    %v74 = vand.u32 %v73, 127
    %75 = vset.pattern.permute.xlu0 0
    %76 = vperm.xlu0 %75, %v72
    %v77 = vpop.permute.xlu0 %76
    %vm78 = vcmp.eq.s32.totalorder %v77, %v74
    %v79 = vsel %vm78, 1, 0
    %v80 = vcvt.s32.f32 %v79
    %v81 = vld [vmem:[#allocation3] sm:$0xff]
    %v82 = vld [vmem:[#allocation3 + $0x8] sm:$0x3]
    %vm83 = vcmask 80896
    %v85 = vsel %vm83, %v80, 0
    %vm87 = vcmask 1041408
    %v89 = vsel %vm87, %v82, 0
    %91 = vmatpush.msra.mxu0 0.0
    %92 = vmatpush.msra.mxu0 0.0
    %93 = vmatpush.msra.mxu0 0.0
    %94 = vmatpush.msra.mxu0 0.0
    %95 = vmatpush.msra.mxu0 0.0
    %96 = vmatpush.msra.mxu0 0.0
    %97 = vmatpush.msra.mxu0 0.0
    %98 = vmatpush.msra.mxu0 0.0
    %99 = vmatpush.msra.mxu0 0.0
    %100 = vmatpush.msra.mxu0 0.0
    %101 = vmatpush.msra.mxu0 0.0
    %102 = vmatpush.msra.mxu0 0.0
    %103 = vmatpush.msra.mxu0 0.0
    %104 = vmatpush.msra.mxu0 0.0
    %105 = vmatpush.msra.mxu0 %v89
    %106 = vmatpush.msra.mxu0 %v81
    %107 = vmatmul.f32.gmra.mxu0 %v85
    %v108 = vpop.f32.mrf.mxu0
    %v109 = vadd.f32 0.0, %v108
    %110 = vdwg.mxu0
    %v111 = vsub.f32 %v71, %v109
    %v112 = vmul.f32 %v111, %v111
    %vm113 = vcmask 261120
    %v115 = vsel %vm113, %v112, 0
    %117 = vmatpush.msra.mxu0 0.0
    %118 = vmatpush.msra.mxu0 0.0
    %119 = vmatpush.msra.mxu0 0.0
    %120 = vmatpush.msra.mxu0 0.0
    %121 = vmatpush.msra.mxu0 0.0
    %122 = vmatpush.msra.mxu0 0.0
    %123 = vmatpush.msra.mxu0 0.0
    %124 = vmatpush.msra.mxu0 0.0
    %125 = vmatpush.msra.mxu0 0.0
    %126 = vmatpush.msra.mxu0 0.0
    %127 = vmatpush.msra.mxu0 0.0
    %128 = vmatpush.msra.mxu0 0.0
    %129 = vmatpush.msra.mxu0 1.0
    %130 = vmatpush.msra.mxu0 1.0
    %131 = vmatpush.msra.mxu0 1.0
    %132 = vmatpush.msra.mxu0 1.0
    %133 = vmatmul.f32.gmra.mxu0 %v115
    %v134 = vpop.f32.mrf.mxu0
    %v135 = vadd.f32 0.0, %v134
    %136 = vdwg.mxu0
    %v137 = vmax.f32 %v135, 1e-12
    %v138 = vmin.f32 %v137, 1e+12
    %s139 = sadd.s32 0, 0
    %s140 = smul.u32 %s139, 8
    %v141 = vlaneseq
    %v142 = vshrl.u32 %v141, 7
    %v143 = vstv %s140
    %v144 = vadd.s32 %v143, %v142
    %vm145 = vcmp.lt.s32.totalorder %v144, 8
    %v146 = vsel %vm145, %v138, 0.0
    %v147 = vld [vmem:[#allocation2] sm:$0xff]
    %v148 = vadd.f32 %v147, %v146
    %vm149 = vcmask 7168
    %150 = vst.msk [vmem:[#allocation2] sm:$0xff] %vm149, %v148
    // Predicated region
    $region22: #{tpu_custom_call.1} parent=1 // pred_check
      %p151 = pneg %p65
    $region23: #{tpu_custom_call.1} parent=1 // pred_check_branch
      %153 = sbr.rel (%p151) target = $region25
    $region24: #{tpu_custom_call.1} parent=1 // pred_region
      %v154 = vld [vmem:[#allocation2] sm:$0xff]
      %v155 = vsel %vm149, %v154, 0.0
      %v156 = vrot.slane %v155, 4
      %v157 = vadd.f32 %v155, %v156
      %v158 = vrot.slane %v157, 2
      %v159 = vadd.f32 %v157, %v158
      %v160 = vrot.slane %v159, 1
      %v161 = vadd.f32 %v159, %v160
      %163 = vset.pattern.permute.xlu0 0
      %164 = vperm.xlu0 %163, %v161
      %v165 = vpop.permute.xlu0 %164
      %167 = vst [vmem:[#allocation6] sm:$0xff] %v165
    $region25: #{tpu_custom_call.1} parent=1 // pred_fallthru
      _
    // Predicated region
    $region26: #{tpu_custom_call.1} parent=1 // pred_check
      _
    $region27: #{tpu_custom_call.1} parent=1 // pred_check_branch
      %169 = sbr.rel (0) target = $region29
    $region28: #{tpu_custom_call.1} parent=1 // pred_region
      %171 = vsyncadd [#allocation5], 0
      %s173 = sshll.u32 [#allocation6], 4
      %s174 = int_to_ptr.vmem [resolvable:$true] %s173
      %s175 = sshll.u32 %s3, 4
      %s176 = int_to_ptr.hbm [resolvable:$true] %s175
      %178 = dma.vmem_to_hbm [thread:$0]  %s174, 128, %s176, [#allocation5]
    $region29: #{tpu_custom_call.1} parent=1 // pred_fallthru
      _
    // Predicated region
    $region30: #{tpu_custom_call.1} parent=1 // pred_check
      _
    $region31: #{tpu_custom_call.1} parent=1 // pred_check_branch
      %180 = sbr.rel (0) target = $region33
    $region32: #{tpu_custom_call.1} parent=1 // pred_region
      %182 = dma.done [#allocation5], 128
    $region33: #{tpu_custom_call.1} parent=1 // pred_fallthru
      _
    %183 = vsyncpa [#allocation4], 1
    %184 = vsyncpa [#allocation5], 1

</llo_original>
